<compile_context>
chip_gen: v7x
topology: tpu7x:2x2x1
jax: 0.10.0
libtpu: 0.0.40
codegen_flags: <defaults>
</compile_context>

<pallas_src>
import jax
import jax.numpy as jnp
from jax.experimental import pallas as pl
from jax.experimental.pallas import tpu as pltpu


def _norm_kernel(x_ref, scale_ref, bias_ref, o_ref):
    # x_ref: (tr, tc); scale_ref / bias_ref: (tr, 1) f32 (broadcast along lanes).
    x = x_ref[...].astype(jnp.float32)
    o_ref[...] = (x * scale_ref[...] + bias_ref[...]).astype(o_ref.dtype)


def _vmem_capacity_bytes():
    """Physical VMEM capacity; conservative (v7x per-TC) fallback."""
    try:
        return int(pltpu.get_tpu_info().vmem_capacity_bytes)
    except Exception:
        return 64 * 1024 * 1024


def _choose_fold(n, c, h, w):
    """Pick hs (divides H): rows = N*C*hs, cols = (H//hs)*W.

    Prefers rows % 8 == 0 (unmasked sublanes), cols % 128 == 0 and cols >= 128
    (lane-dense stores), then the widest rows among equal layouts.
    """
    rows0 = n * c
    best_score, best_hs = None, 1
    for hs in range(1, h + 1):
        if h % hs:
            continue
        rows = rows0 * hs
        cols = (h // hs) * w
        score = (
            rows % 8 == 0,
            cols % 128 == 0,
            cols >= 128,
            rows >= 8,
            cols,
        )
        if best_score is None or score > best_score:
            best_score, best_hs = score, hs
    return best_hs


def _pick_tiles(rows, cols, itemsize, target_block_bytes):
    """Largest (8,128)-aligned tile within ~target_block_bytes, >=2 blocks for big slabs."""
    # Lane tile: full width if it fits with >= 8 sublanes, else a multiple of 128.
    if cols <= 128 or cols * 8 * itemsize <= target_block_bytes:
        tc = cols
    else:
        tc = max(128, (target_block_bytes // (8 * itemsize)) // 128 * 128)
        tc = min(tc, max(128, (cols // 128) * 128))

    # Sublane tile: grow toward the byte budget in multiples of 8 (no hard cap).
    max_tr = max(8, (target_block_bytes // (tc * itemsize)) // 8 * 8)
    if rows <= max_tr:
        tr = rows
    else:
        tr = max(8, min(max_tr, (rows // 8) * 8))

    # Guarantee >= 2 blocks along a parallel axis for mid/large slabs so the
    # auto-pipeline double-buffers and (on v7x) both TensorCores get work.
    slab_bytes = rows * cols * itemsize
    if slab_bytes > (1 << 20) and pl.cdiv(rows, tr) == 1 and pl.cdiv(cols, tc) == 1:
        if rows >= 16:
            half = max(8, ((rows + 1) // 2 + 7) // 8 * 8)
            if half < rows:
                tr = half
            else:
                tr = max(8, (rows // 2) // 8 * 8)
        elif cols >= 256:
            tc = max(128, ((cols // 2) // 128) * 128)
    return tr, tc


def normalization(img, means, stds, *, donate_img=False):
    """(img - mean[:, None, None]) / std[:, None, None] over NCHW input."""
    n, c, h, w = img.shape
    out_dtype = jnp.promote_types(img.dtype, jnp.float32)

    # Fold part of H into rows if needed so sublanes stay full and lanes dense.
    hs = _choose_fold(n, c, h, w)
    rows = n * c * hs
    cols = (h // hs) * w

    # Exact per-channel scale/bias in f32, replicated per folded row.
    scale_c = 1.0 / stds.astype(jnp.float32)
    bias_c = (-means.astype(jnp.float32)) * scale_c
    scale_rows = jnp.tile(jnp.repeat(scale_c, hs), n).reshape(rows, 1)
    bias_rows = jnp.tile(jnp.repeat(bias_c, hs), n).reshape(rows, 1)

    # Contiguous (layout-free) 2-D view: each row lies inside a single channel.
    x2 = img.reshape(rows, cols)

    in_bytes = jnp.dtype(img.dtype).itemsize
    out_bytes = jnp.dtype(out_dtype).itemsize
    itemsize = max(in_bytes, out_bytes)

    vmem_cap = _vmem_capacity_bytes()
    # ~8 MiB blocks; never ask for more than 1/8 of physical VMEM per block.
    target_block = max(1 << 20, min(8 << 20, vmem_cap // 8))

    tr, tc = _pick_tiles(rows, cols, itemsize, target_block)
    grid = (pl.cdiv(rows, tr), pl.cdiv(cols, tc))

    # Double-buffered input + output blocks + tiny scale/bias tiles + slack,
    # clamped to 3/4 of physical VMEM (respects v7x's 64 MiB).
    block_vmem = tr * tc * (2 * in_bytes + 2 * out_bytes)
    vmem_limit = int(min(max(32 << 20, block_vmem + (4 << 20)), (vmem_cap * 3) // 4))

    io_aliases = {}
    if donate_img and jnp.dtype(img.dtype) == jnp.dtype(out_dtype):
        io_aliases = {0: 0}

    out2 = pl.pallas_call(
        _norm_kernel,
        out_shape=jax.ShapeDtypeStruct((rows, cols), out_dtype),
        grid_spec=pltpu.PrefetchScalarGridSpec(
            num_scalar_prefetch=0,
            grid=grid,
            in_specs=[
                pl.BlockSpec((tr, tc), lambda i, j: (i, j)),
                pl.BlockSpec((tr, 1), lambda i, j: (i, 0)),
                pl.BlockSpec((tr, 1), lambda i, j: (i, 0)),
            ],
            out_specs=pl.BlockSpec((tr, tc), lambda i, j: (i, j)),
        ),
        compiler_params=pltpu.CompilerParams(
            dimension_semantics=("parallel", "parallel"),
            vmem_limit_bytes=vmem_limit,
        ),
        input_output_aliases=io_aliases,
    )(x2, scale_rows, bias_rows)

    return out2.reshape(n, c, h, w)


if __name__ == "__main__":
    key = jax.random.PRNGKey(0)
    N, C, H, W = 2, 4, 16, 16

    # Deterministic "parameters" (per-channel means / standard deviations).
    means = jnp.array([0.485, 0.456, 0.406, 0.400], dtype=jnp.float32)
    stds = jnp.array([0.229, 0.224, 0.225, 0.200], dtype=jnp.float32)

    img = jax.random.uniform(key, (N, C, H, W), dtype=jnp.float32)

    out = normalization(img, means, stds)
    out = jax.block_until_ready(out)

    # Reference check against the PyTorch module's broadcasting semantics.
    ref = (img - means.reshape(1, C, 1, 1)) / stds.reshape(1, C, 1, 1)
    assert out.shape == (N, C, H, W)
    assert out.dtype == jnp.float32
    assert jnp.allclose(out, ref, rtol=1e-6, atol=1e-5)

    print("KERNEL_OK")
</pallas_src>

<mosaic_0001>
module attributes {stable_mosaic.version = 11 : i64} {
  func.func @_norm_kernel(%arg0: i32, %arg1: i32, %arg2: memref<8x256xf32, #tpu.memory_space<vmem>>, %arg3: memref<8x1xf32, #tpu.memory_space<vmem>>, %arg4: memref<8x1xf32, #tpu.memory_space<vmem>>, %arg5: memref<8x256xf32, #tpu.memory_space<vmem>>) attributes {dimension_semantics = [#tpu.dimension_semantics<parallel>, #tpu.dimension_semantics<parallel>], iteration_bounds = array<i64: 1, 1>, scalar_prefetch = 0 : i64, scratch_operands = 0 : i64, tpu.core_type = #tpu.core_type<tc>, window_params = [{transform_indices = @transform_0, window_bounds = array<i64: 8, 256>}, {transform_indices = @transform_1, window_bounds = array<i64: 8, 1>}, {transform_indices = @transform_2, window_bounds = array<i64: 8, 1>}, {transform_indices = @transform_3, window_bounds = array<i64: 8, 256>}]} {
    %c0 = arith.constant 0 : index
    %c0_0 = arith.constant 0 : index
    %0 = vector.load %arg2[%c0, %c0_0] : memref<8x256xf32, #tpu.memory_space<vmem>>, vector<8x256xf32>
    %c0_1 = arith.constant 0 : index
    %c0_2 = arith.constant 0 : index
    %1 = vector.load %arg3[%c0_1, %c0_2] : memref<8x1xf32, #tpu.memory_space<vmem>>, vector<8x1xf32>
    %2 = vector.broadcast %1 : vector<8x1xf32> to vector<8x256xf32>
    %3 = arith.mulf %0, %2 : vector<8x256xf32>
    %c0_3 = arith.constant 0 : index
    %c0_4 = arith.constant 0 : index
    %4 = vector.load %arg4[%c0_3, %c0_4] : memref<8x1xf32, #tpu.memory_space<vmem>>, vector<8x1xf32>
    %5 = vector.broadcast %4 : vector<8x1xf32> to vector<8x256xf32>
    %6 = arith.addf %3, %5 : vector<8x256xf32>
    %c0_5 = arith.constant 0 : index
    %c0_6 = arith.constant 0 : index
    %7 = vector.load %arg5[%c0_5, %c0_6] : memref<8x256xf32, #tpu.memory_space<vmem>>, vector<8x256xf32>
    tpu.vector_store %arg5[%c0_5, %c0_6], %6 {strides = array<i32>} : memref<8x256xf32, #tpu.memory_space<vmem>>, vector<8x256xf32>,
    return
  }
  func.func @transform_0(%arg0: i32, %arg1: i32) -> (i32, i32) {
    %c0_i32 = arith.constant 0 : i32
    return %arg0, %arg1 : i32, i32
  }
  func.func @transform_1(%arg0: i32, %arg1: i32) -> (i32, i32) {
    %c0_i32 = arith.constant 0 : i32
    %c0_i32_0 = arith.constant 0 : i32
    return %arg0, %c0_i32 : i32, i32
  }
  func.func @transform_2(%arg0: i32, %arg1: i32) -> (i32, i32) {
    %c0_i32 = arith.constant 0 : i32
    %c0_i32_0 = arith.constant 0 : i32
    return %arg0, %c0_i32 : i32, i32
  }
  func.func @transform_3(%arg0: i32, %arg1: i32) -> (i32, i32) {
    %c0_i32 = arith.constant 0 : i32
    return %arg0, %arg1 : i32, i32
  }
}

</mosaic_0001>

<llo_original>
// kernel: tpu_custom_call.1
$region0: #{tpu_custom_call.1}
  #allocation0 [shape = 'u32[]', space=smem, size = 0x4, offset = 0x4, fixed_abs, tag = 'smem constant byte address 0x4 - core index']
  #allocation1 [shape = 'u32[144,128]{1,0:T(1,128)}', space=vmem, size = 0x12000, scoped, tag = 'internal scratch']
  %s0 = inlined_call_operand.vmem [shape: f32[8,256], index: 0, kind: input, shape index: {}]
  %s1 = inlined_call_operand.vmem [shape: f32[8,1], index: 1, kind: input, shape index: {}]
  %s2 = inlined_call_operand.vmem [shape: f32[8,1], index: 2, kind: input, shape index: {}]
  %s3 = inlined_call_operand.hbm [shape: f32[8,256], index: 3, kind: output, shape index: {}]
  %s4 = sld [smem:[#allocation0]]
  $region22: #{tpu_custom_call.1} parent=0
    _
  %s6 = ssub.s32 1, %s4
  %s7 = scalar_select 0, %s6, %s4
  $region1: #{tpu_custom_call.1} parent=0
    #allocation2 [shape = 'u8[8192]{0}', space=vmem, size = 0x2000, scoped, tag = 'output window, operand 0, single buffered']
    #allocation3 [shape = 's32[1]{0}', space=sflag, size = 0x4, scoped, tag = 'scoped memory for tpu_custom_call.1']
    %8 = vsyncpa [#allocation3], 0
    // Predicated region
    $region2: #{tpu_custom_call.1} parent=1 // pred_check
      _
    $region3: #{tpu_custom_call.1} parent=1 // pred_check_branch
      %10 = sbr.rel (0) target = $region5
    $region4: #{tpu_custom_call.1} parent=1 // pred_region
      _
    $region5: #{tpu_custom_call.1} parent=1 // pred_fallthru
      _
    // Predicated region
    $region6: #{tpu_custom_call.1} parent=1 // pred_check
      _
    $region7: #{tpu_custom_call.1} parent=1 // pred_check_branch
      %12 = sbr.rel (0) target = $region9
    $region8: #{tpu_custom_call.1} parent=1 // pred_region
      _
    $region9: #{tpu_custom_call.1} parent=1 // pred_fallthru
      _
    // Predicated region
    $region10: #{tpu_custom_call.1} parent=1 // pred_check
      _
    $region11: #{tpu_custom_call.1} parent=1 // pred_check_branch
      %14 = sbr.rel (0) target = $region13
    $region12: #{tpu_custom_call.1} parent=1 // pred_region
      _
    $region13: #{tpu_custom_call.1} parent=1 // pred_fallthru
      _
    %v15 = vld [vmem:[%s0] sm:$0xff]
    %v16 = vld [vmem:[%s0 + $0x8] sm:$0xff]
    %v17 = vld [vmem:[%s1] sm:$0xff]
    %19 = vset.pattern.permute.xlu0 0
    %20 = vperm.xlu0 %19, %v17
    %v21 = vpop.permute.xlu0 %20
    %v23 = vmul.f32 %v15, %v21
    %v24 = vmul.f32 %v16, %v21
    %v25 = vld [vmem:[%s2] sm:$0xff]
    %27 = vset.pattern.permute.xlu0 0
    %28 = vperm.xlu0 %27, %v25
    %v29 = vpop.permute.xlu0 %28
    %v31 = vadd.f32 %v23, %v29
    %v32 = vadd.f32 %v24, %v29
    %33 = vst [vmem:[#allocation2] sm:$0xff] %v31
    %34 = vst [vmem:[#allocation2 + $0x8] sm:$0xff] %v32
    // Predicated region
    $region14: #{tpu_custom_call.1} parent=1 // pred_check
      _
    $region15: #{tpu_custom_call.1} parent=1 // pred_check_branch
      %36 = sbr.rel (0) target = $region17
    $region16: #{tpu_custom_call.1} parent=1 // pred_region
      %s38 = ssub.s32 256, 256
      %39 = vsyncadd [#allocation3], %s38
      %s41 = sshll.u32 [#allocation2], 4
      %s42 = int_to_ptr.vmem [resolvable:$true] %s41
      %44 = dma.vmem_to_hbm [thread:$0]  %s42, 256, %s3, [#allocation3]
    $region17: #{tpu_custom_call.1} parent=1 // pred_fallthru
      _
    // Predicated region
    $region18: #{tpu_custom_call.1} parent=1 // pred_check
      _
    $region19: #{tpu_custom_call.1} parent=1 // pred_check_branch
      %46 = sbr.rel (0) target = $region21
    $region20: #{tpu_custom_call.1} parent=1 // pred_region
      %47 = dma.done [#allocation3], 256
    $region21: #{tpu_custom_call.1} parent=1 // pred_fallthru
      _
    %48 = vsyncpa [#allocation3], 1

</llo_original>
